<compile_context>
chip_gen: v6e
topology: v6e:2x2x1
jax: 0.10.0
libtpu: 0.0.40
codegen_flags: <defaults>
</compile_context>

<pallas_src>
import jax
import jax.numpy as jnp
from jax.experimental import pallas as pl
from jax.experimental.pallas import tpu as pltpu

NB_TERRITORIES = 6
HIDDEN_SIZE = 16

BOARDS_PER_ROW = 8          # boards packed per 128-lane row
LANES_PER_BOARD = 16        # T=6 padded to 16 lanes per board
COLS = BOARDS_PER_ROW * LANES_PER_BOARD   # 128 = full f32 vreg lane width
DEFAULT_TARGET_ROWS = 512   # rows (x128 lanes) per grid step; ~1.5 MiB tiles,
                            # safe even against v7x's 64 MiB physical VMEM


def _deploy_kernel(ppm_ref, w_ref, b_ref, out_ref):
    ppm = ppm_ref[...]                              # [R, 128], 8 boards per row

    w1_bd = w_ref[:, 0:COLS]                        # block-diag 8 x (16x16) W1
    w2_bd = w_ref[:, COLS:2 * COLS]                 # block-diag 8 x (16x16) W2
    ones_bd = w_ref[:, 2 * COLS:3 * COLS]           # block-diag 8 x (16x16) ones
    b1 = b_ref[0:1, :]                              # [1, 128] tiled input_fc bias
    b2 = b_ref[1:2, :]                              # [1, 128] tiled output_fc bias

    # x = tanh(input_fc(ppm)) ; x = tanh(output_fc(x)), 8 boards at once per row.
    h = jnp.tanh(jnp.dot(ppm, w1_bd, preferred_element_type=jnp.float32) + b1)
    logits = jnp.tanh(jnp.dot(h, w2_bd, preferred_element_type=jnp.float32) + b2)

    # Masked softmax numerator.  No max-subtraction needed: logits are in
    # [-1, 1], and masking to exactly 0 is identical to exp(-1000) in f32
    # (the torch reference's -1000 branch underflows to 0 the same way).
    e = jnp.where(ppm > 0.0, jnp.exp(logits), 0.0)

    # Per-board (16-lane group) softmax denominator via one MXU matmul against
    # the block-diagonal ones matrix: every lane of a group receives that
    # group's sum, so no XLU cross-lane reduce and no broadcast is needed.
    s = jnp.dot(e, ones_bd, preferred_element_type=jnp.float32)
    s = jnp.maximum(s, 1e-30)               # all-zero padding boards -> 0, not NaN

    inv = pl.reciprocal(s, approx=True)     # EUP vrcp (free slot) ...
    inv = inv * (2.0 - s * inv)             # ... + one Newton step (~1e-8 rel err)
    out_ref[...] = e * inv


def pack_params(params):
    """Pack (W1, b1, W2, b2) into the block-diagonal slabs.  Call ONCE."""
    w1, b1, w2, b2 = params  # w1:[T,H], b1:[H], w2:[H,T], b2:[T]  ([in, out])
    T, H = w1.shape
    assert T <= LANES_PER_BOARD and H <= LANES_PER_BOARD
    L, G = LANES_PER_BOARD, BOARDS_PER_ROW

    w1p = jnp.zeros((L, L), jnp.float32).at[:T, :H].set(w1.astype(jnp.float32))
    w2p = jnp.zeros((L, L), jnp.float32).at[:H, :T].set(w2.astype(jnp.float32))
    eye = jnp.eye(G, dtype=jnp.float32)
    w1_bd = jnp.kron(eye, w1p)                                   # [128, 128]
    w2_bd = jnp.kron(eye, w2p)                                   # [128, 128]
    ones_bd = jnp.kron(eye, jnp.ones((L, L), jnp.float32))       # [128, 128]
    w_slab = jnp.concatenate([w1_bd, w2_bd, ones_bd], axis=1)    # [128, 384]

    b1t = jnp.tile(jnp.zeros((L,), jnp.float32).at[:H].set(b1.astype(jnp.float32)), G)
    b2t = jnp.tile(jnp.zeros((L,), jnp.float32).at[:T].set(b2.astype(jnp.float32)), G)
    bias_slab = jnp.zeros((8, COLS), jnp.float32).at[0].set(b1t).at[1].set(b2t)
    return w_slab, bias_slab


def _round_up(n, m):
    return ((n + m - 1) // m) * m


def _choose_block_rows(rows, target=DEFAULT_TARGET_ROWS):
    """Rows per grid step: as large as possible (<= target) but >= 2 grid steps
    when the batch allows, so v7x megacore can use both TensorCores."""
    r8 = max(8, _round_up(rows, 8))
    if r8 <= 8:
        return 8
    n_blocks = max(2, pl.cdiv(r8, target))
    return max(8, _round_up(pl.cdiv(r8, n_blocks), 8))


def deploy_net_forward_batch(ppm_batch, w_slab, bias_slab, *, block_rows=None):
    """ppm_batch: [B, T] f32 boards -> [B, T] deployment probabilities."""
    B, T = ppm_batch.shape
    assert T == NB_TERRITORIES

    rows = pl.cdiv(B, BOARDS_PER_ROW)
    if block_rows is None:
        block_rows = _choose_block_rows(rows)
    assert block_rows % 8 == 0, "block_rows must be a multiple of 8 sublanes"
    r_pad = _round_up(rows, block_rows)
    boards_pad = r_pad * BOARDS_PER_ROW

    # [B, 6] -> [boards_pad, 16] -> [r_pad, 128]: one small XLA pad + reshape
    # (no 128-lane-per-board zero slab is ever materialized in HBM).
    ppm_packed = jnp.pad(
        ppm_batch.astype(jnp.float32),
        ((0, boards_pad - B), (0, LANES_PER_BOARD - T)),
    ).reshape(r_pad, COLS)

    grid = (r_pad // block_rows,)
    cost = pl.CostEstimate(
        flops=3 * 2 * r_pad * COLS * COLS,               # 3 matmuls per row-block
        transcendentals=3 * r_pad * COLS,                # 2 tanh + 1 exp per lane
        bytes_accessed=4 * (2 * r_pad * COLS + 3 * COLS * COLS + 8 * COLS),
    )

    out = pl.pallas_call(
        _deploy_kernel,
        out_shape=jax.ShapeDtypeStruct((r_pad, COLS), jnp.float32),
        grid=grid,
        in_specs=[
            # per-step row-block of packed boards
            pl.BlockSpec((block_rows, COLS), lambda i: (i, 0)),
            # weight slab: same block every step -> stays VMEM-resident
            pl.BlockSpec((COLS, 3 * COLS), lambda i: (0, 0)),
            # bias slab: same block every step -> stays VMEM-resident
            pl.BlockSpec((8, COLS), lambda i: (0, 0)),
        ],
        out_specs=pl.BlockSpec((block_rows, COLS), lambda i: (i, 0)),
        compiler_params=pltpu.CompilerParams(
            dimension_semantics=("parallel",),  # v7x: split row-blocks across both TCs
        ),
        cost_estimate=cost,
    )(ppm_packed, w_slab, bias_slab)

    return out.reshape(boards_pad, LANES_PER_BOARD)[:B, :T]


def deploy_net_forward(reinforcements, player_presence_map, w_slab, bias_slab):
    """Torch-equivalent single-board API: ppm [T] -> probs [1, T].

    Off the hot path: at B=1 the call is dominated by launch/pipeline overhead;
    batch boards across games/timesteps and use deploy_net_forward_batch.
    """
    del reinforcements  # never used by DeployNet.forward's compute graph
    return deploy_net_forward_batch(player_presence_map[None, :], w_slab, bias_slab)


def init_params(key, nb_territories=NB_TERRITORIES, hidden_size=HIDDEN_SIZE):
    """Deterministic init mimicking nn.Linear's U(-1/sqrt(fan_in), 1/sqrt(fan_in))."""
    k1, k2, k3, k4 = jax.random.split(key, 4)
    lim1 = 1.0 / jnp.sqrt(nb_territories)
    lim2 = 1.0 / jnp.sqrt(hidden_size)
    # Stored as [in, out] so the kernel computes x @ W + b (== torch x @ W.T + b).
    w1 = jax.random.uniform(k1, (nb_territories, hidden_size), jnp.float32, -lim1, lim1)
    b1 = jax.random.uniform(k2, (hidden_size,), jnp.float32, -lim1, lim1)
    w2 = jax.random.uniform(k3, (hidden_size, nb_territories), jnp.float32, -lim2, lim2)
    b2 = jax.random.uniform(k4, (nb_territories,), jnp.float32, -lim2, lim2)
    return (w1, b1, w2, b2)


def _reference_forward_batch(ppm_batch, params):
    """Pure-JAX mirror of the torch module (for correctness checking)."""
    w1, b1, w2, b2 = params
    x = jnp.tanh(ppm_batch @ w1 + b1)
    x = jnp.tanh(x @ w2 + b2)
    logits = jnp.where(ppm_batch > 0, x, -1000.0)
    return jax.nn.softmax(logits, axis=1)


if __name__ == "__main__":
    key = jax.random.PRNGKey(0)
    k_params, k_boards = jax.random.split(key)

    params = init_params(k_params)
    w_slab, bias_slab = pack_params(params)  # packed once; only per-call work is pad+reshape

    # A batch of boards (troop counts per territory; zeros = not present).
    # Every board has at least one occupied territory, as the game guarantees.
    B = 200
    troops = jnp.floor(jax.random.uniform(k_boards, (B, NB_TERRITORIES)) * 5.0)
    troops = troops.at[:, 0].set(jnp.maximum(troops[:, 0], 1.0)).astype(jnp.float32)
    reinforcements = jnp.array([4.0], jnp.float32)  # unused by forward, as in torch

    ref_b = _reference_forward_batch(troops, params)

    # Batched path: dense 8-boards-per-row packing, >= 2 grid steps.
    probs_b = jax.block_until_ready(deploy_net_forward_batch(troops, w_slab, bias_slab))
    assert probs_b.shape == (B, NB_TERRITORIES)
    assert jnp.allclose(probs_b, ref_b, atol=1e-5), (probs_b, ref_b)
    assert jnp.allclose(jnp.sum(probs_b, axis=1), 1.0, atol=1e-5)

    # Odd small batch exercising both row- and lane-padding paths.
    probs_s = jax.block_until_ready(deploy_net_forward_batch(troops[:10], w_slab, bias_slab))
    assert probs_s.shape == (10, NB_TERRITORIES)
    assert jnp.allclose(probs_s, ref_b[:10], atol=1e-5), (probs_s, ref_b[:10])

    # Torch-style single-board path.
    probs_1 = jax.block_until_ready(
        deploy_net_forward(reinforcements, troops[0], w_slab, bias_slab))
    assert probs_1.shape == (1, NB_TERRITORIES)
    assert jnp.allclose(probs_1, ref_b[0:1], atol=1e-5), (probs_1, ref_b[0:1])

    print("KERNEL_OK")
</pallas_src>

<mosaic_0001>
module attributes {stable_mosaic.version = 11 : i64} {
  func.func @_deploy_kernel(%arg0: i32, %arg1: memref<16x128xf32, #tpu.memory_space<vmem>>, %arg2: memref<128x384xf32, #tpu.memory_space<vmem>>, %arg3: memref<8x128xf32, #tpu.memory_space<vmem>>, %arg4: memref<16x128xf32, #tpu.memory_space<vmem>>) attributes {dimension_semantics = [#tpu.dimension_semantics<parallel>], iteration_bounds = array<i64: 2>, scalar_prefetch = 0 : i64, scratch_operands = 0 : i64, tpu.core_type = #tpu.core_type<tc>, window_params = [{transform_indices = @transform_0, window_bounds = array<i64: 16, 128>}, {pipeline_mode = #tpu.pipeline_mode<synchronous>, transform_indices = @transform_1, window_bounds = array<i64: 128, 384>}, {pipeline_mode = #tpu.pipeline_mode<synchronous>, transform_indices = @transform_2, window_bounds = array<i64: 8, 128>}, {transform_indices = @transform_3, window_bounds = array<i64: 16, 128>}]} {
    %c0 = arith.constant 0 : index
    %c0_0 = arith.constant 0 : index
    %0 = vector.load %arg1[%c0, %c0_0] : memref<16x128xf32, #tpu.memory_space<vmem>>, vector<16x128xf32>
    %c0_1 = arith.constant 0 : index
    %c0_2 = arith.constant 0 : index
    %1 = vector.load %arg2[%c0_1, %c0_2] : memref<128x384xf32, #tpu.memory_space<vmem>>, vector<128x128xf32>
    %c0_3 = arith.constant 0 : index
    %c128 = arith.constant 128 : index
    %2 = vector.load %arg2[%c0_3, %c128] : memref<128x384xf32, #tpu.memory_space<vmem>>, vector<128x128xf32>
    %c0_4 = arith.constant 0 : index
    %c256 = arith.constant 256 : index
    %3 = vector.load %arg2[%c0_4, %c256] : memref<128x384xf32, #tpu.memory_space<vmem>>, vector<128x128xf32>
    %c0_5 = arith.constant 0 : index
    %c0_6 = arith.constant 0 : index
    %4 = vector.load %arg3[%c0_5, %c0_6] : memref<8x128xf32, #tpu.memory_space<vmem>>, vector<1x128xf32>
    %c1 = arith.constant 1 : index
    %c0_7 = arith.constant 0 : index
    %5 = vector.load %arg3[%c1, %c0_7] : memref<8x128xf32, #tpu.memory_space<vmem>>, vector<1x128xf32>
    %cst = arith.constant dense<0.000000e+00> : vector<16x128xf32>
    %6 = tpu.matmul %0, %1, %cst {dimension_numbers = #tpu.dot_dimension_numbers<[1], [0], [0], [1], [0, 0, 1, 1], [], []>} : vector<16x128xf32>, vector<128x128xf32>, vector<16x128xf32> -> vector<16x128xf32>
    %7 = vector.broadcast %4 : vector<1x128xf32> to vector<16x128xf32>
    %8 = arith.addf %6, %7 : vector<16x128xf32>
    %9 = math.tanh %8 : vector<16x128xf32>
    %cst_8 = arith.constant dense<0.000000e+00> : vector<16x128xf32>
    %10 = tpu.matmul %9, %2, %cst_8 {dimension_numbers = #tpu.dot_dimension_numbers<[1], [0], [0], [1], [0, 0, 1, 1], [], []>} : vector<16x128xf32>, vector<128x128xf32>, vector<16x128xf32> -> vector<16x128xf32>
    %11 = vector.broadcast %5 : vector<1x128xf32> to vector<16x128xf32>
    %12 = arith.addf %10, %11 : vector<16x128xf32>
    %13 = math.tanh %12 : vector<16x128xf32>
    %cst_9 = arith.constant 0.000000e+00 : f32
    %14 = vector.broadcast %cst_9 : f32 to vector<16x128xf32>
    %15 = arith.cmpf ogt, %0, %14 : vector<16x128xf32>
    %16 = math.exp %13 : vector<16x128xf32>
    %cst_10 = arith.constant 0.000000e+00 : f32
    %17 = vector.broadcast %cst_10 : f32 to vector<16x128xf32>
    %18 = arith.select %15, %16, %17 : vector<16x128xi1>, vector<16x128xf32>
    %cst_11 = arith.constant dense<0.000000e+00> : vector<16x128xf32>
    %19 = tpu.matmul %18, %3, %cst_11 {dimension_numbers = #tpu.dot_dimension_numbers<[1], [0], [0], [1], [0, 0, 1, 1], [], []>} : vector<16x128xf32>, vector<128x128xf32>, vector<16x128xf32> -> vector<16x128xf32>
    %cst_12 = arith.constant 1.000000e-30 : f32
    %20 = vector.broadcast %cst_12 : f32 to vector<16x128xf32>
    %21 = arith.maximumf %19, %20 : vector<16x128xf32>
    %22 = tpu.reciprocal %21 {approx = true} : vector<16x128xf32> -> vector<16x128xf32>
    %23 = arith.mulf %21, %22 : vector<16x128xf32>
    %cst_13 = arith.constant 2.000000e+00 : f32
    %24 = vector.broadcast %cst_13 : f32 to vector<16x128xf32>
    %25 = arith.subf %24, %23 : vector<16x128xf32>
    %26 = arith.mulf %22, %25 : vector<16x128xf32>
    %27 = arith.mulf %18, %26 : vector<16x128xf32>
    %c0_14 = arith.constant 0 : index
    %c0_15 = arith.constant 0 : index
    %28 = vector.load %arg4[%c0_14, %c0_15] : memref<16x128xf32, #tpu.memory_space<vmem>>, vector<16x128xf32>
    tpu.vector_store %arg4[%c0_14, %c0_15], %27 {strides = array<i32>} : memref<16x128xf32, #tpu.memory_space<vmem>>, vector<16x128xf32>,
    return
  }
  func.func @transform_0(%arg0: i32) -> (i32, i32) {
    %c0_i32 = arith.constant 0 : i32
    %c0_i32_0 = arith.constant 0 : i32
    return %arg0, %c0_i32 : i32, i32
  }
  func.func @transform_1(%arg0: i32) -> (i32, i32) {
    %c0_i32 = arith.constant 0 : i32
    %c0_i32_0 = arith.constant 0 : i32
    %c0_i32_1 = arith.constant 0 : i32
    return %c0_i32, %c0_i32_0 : i32, i32
  }
  func.func @transform_2(%arg0: i32) -> (i32, i32) {
    %c0_i32 = arith.constant 0 : i32
    %c0_i32_0 = arith.constant 0 : i32
    %c0_i32_1 = arith.constant 0 : i32
    return %c0_i32, %c0_i32_0 : i32, i32
  }
  func.func @transform_3(%arg0: i32) -> (i32, i32) {
    %c0_i32 = arith.constant 0 : i32
    %c0_i32_0 = arith.constant 0 : i32
    return %arg0, %c0_i32 : i32, i32
  }
}

</mosaic_0001>

<llo_original>
// kernel: tpu_custom_call.1
$region0: #{tpu_custom_call.1}
  #allocation0 [shape = 'u32[]', space=smem, size = 0x4, offset = 0x4, fixed_abs, tag = 'smem constant byte address 0x4 - core index']
  #allocation1 [shape = 'u32[144,128]{1,0:T(1,128)}', space=vmem, size = 0x12000, scoped, tag = 'internal scratch']
  %s0 = inlined_call_operand.hbm [shape: f32[32,128], index: 0, kind: input, shape index: {}]
  %s1 = inlined_call_operand.hbm [shape: f32[128,384], index: 1, kind: input, shape index: {}]
  %s2 = inlined_call_operand.hbm [shape: f32[8,128], index: 2, kind: input, shape index: {}]
  %s3 = inlined_call_operand.hbm [shape: f32[32,128], index: 3, kind: output, shape index: {}]
  %s4 = sld [smem:[#allocation0]]
  $region57: #{tpu_custom_call.1} parent=0
    _
  %s6 = ssub.s32 1, %s4
  %s7 = scalar_select 0, %s6, %s4
  $region1: #{tpu_custom_call.1} parent=0
    #allocation2 [shape = 'u8[16384]{0}', space=vmem, size = 0x4000, scoped, tag = 'input window, operand 0']
    #allocation3 [shape = 's32[2]{0}', space=sflag, size = 0x8, scoped, tag = 'scoped memory for tpu_custom_call.1']
    #allocation4 [shape = 's32[2]{0}', space=sflag, size = 0x8, scoped, tag = 'scoped memory for tpu_custom_call.1']
    #allocation5 [shape = 'u8[196608]{0}', space=vmem, size = 0x30000, scoped, tag = 'input window, operand 1, single buffered']
    #allocation6 [shape = 's32[1]{0}', space=sflag, size = 0x4, scoped, tag = 'scoped memory for tpu_custom_call.1']
    #allocation7 [shape = 'u8[4096]{0}', space=vmem, size = 0x1000, scoped, tag = 'input window, operand 2, single buffered']
    #allocation8 [shape = 'u8[16384]{0}', space=vmem, size = 0x4000, scoped, tag = 'output window, operand 0']
    %8 = vsyncpa [#allocation3], 0
    %s9 = scalar_lea.sflag [#allocation3], 1
    %10 = vsyncpa %s9, 0
    %11 = vsyncpa [#allocation6], 0
    %12 = vsyncpa [#allocation4], 0
    %s13 = scalar_lea.sflag [#allocation4], 1
    %14 = vsyncpa %s13, 0
    loop: start=0, step=1, limit=4
    $region2: #{tpu_custom_call.1} parent=1 // loop_pre_header
      _
    $region3: #{tpu_custom_call.1} parent=1 // loop_header
      %s16 = sphi 0, %s20
      %p17 = scmp.ge.s32.totalorder %s16, 4
      %s26 = sphi 0, %s28
      %s29 = sphi 0, %s26
      %s30 = sphi 0, %s29
      %s46 = sphi 0, %s30
      %s50 = sphi 0, %s50
      %s52 = sphi 0, %s50
      %s53 = sphi 0, %s52
      %s67 = sphi 0, %s53
      %s71 = sphi 0, %s71
      %s73 = sphi 0, %s71
      %s74 = sphi 0, %s73
      %s88 = sphi 0, %s74
      %s94 = sphi 0, %s96
      %s97 = sphi 0, %s94
      %s98 = sphi 0, %s97
      %s114 = sphi 0, %s98
    $region4: #{tpu_custom_call.1} parent=1 // loop_header_branch
      %19 = sbr.rel (%p17) target = $region8
    $region5: #{tpu_custom_call.1} parent=1 // loop_body
      %s21 = ssub.s32 %s16, 1
      %s22 = ssub.s32 %s16, 2
      %s23 = sadd.s32 %s16, 1
      %s24 = ssub.s32 %s16, %s23
      %p25 = scmp.eq.s32.totalorder %s24, 0
      %s27 = sadd.s32 %s26, 1
      %s28 = scalar_select %p25, %s26, %s27
      %p31 = pneg %p25
      %p32 = scmp.eq.s32.totalorder %s16, 1
      %p33 = por %p31, %p32
      %p34 = scmp.ne.s32.totalorder %s26, %s29
      %p35 = scmp.eq.s32.totalorder %s16, 0
      %p36 = por %p34, %p35
      %p37 = scmp.ne.s32.totalorder %s26, %s29
      %p38 = scmp.eq.s32.totalorder %s21, 1
      %p39 = por %p37, %p38
      %p40 = scmp.ne.s32.totalorder %s29, %s30
      %p41 = scmp.eq.s32.totalorder %s21, 0
      %p42 = por %p40, %p41
      %p43 = scmp.ne.s32.totalorder %s29, %s30
      %p44 = scmp.eq.s32.totalorder %s22, 1
      %p45 = por %p43, %p44
      %p47 = scmp.ne.s32.totalorder %s30, %s46
      %p48 = scmp.eq.s32.totalorder %s22, 0
      %p49 = por %p47, %p48
      %s51 = sadd.s32 %s50, 1
      %p54 = scmp.eq.s32.totalorder %s16, 1
      %p55 = scmp.ne.s32.totalorder %s50, %s52
      %p56 = scmp.eq.s32.totalorder %s16, 0
      %p57 = por %p55, %p56
      %p58 = scmp.ne.s32.totalorder %s50, %s52
      %p59 = scmp.eq.s32.totalorder %s21, 1
      %p60 = por %p58, %p59
      %p61 = scmp.ne.s32.totalorder %s52, %s53
      %p62 = scmp.eq.s32.totalorder %s21, 0
      %p63 = por %p61, %p62
      %p64 = scmp.ne.s32.totalorder %s52, %s53
      %p65 = scmp.eq.s32.totalorder %s22, 1
      %p66 = por %p64, %p65
      %p68 = scmp.ne.s32.totalorder %s53, %s67
      %p69 = scmp.eq.s32.totalorder %s22, 0
      %p70 = por %p68, %p69
      %s72 = sadd.s32 %s71, 1
      %p75 = scmp.eq.s32.totalorder %s16, 1
      %p76 = scmp.ne.s32.totalorder %s71, %s73
      %p77 = scmp.eq.s32.totalorder %s16, 0
      %p78 = por %p76, %p77
      %p79 = scmp.ne.s32.totalorder %s71, %s73
      %p80 = scmp.eq.s32.totalorder %s21, 1
      %p81 = por %p79, %p80
      %p82 = scmp.ne.s32.totalorder %s73, %s74
      %p83 = scmp.eq.s32.totalorder %s21, 0
      %p84 = por %p82, %p83
      %p85 = scmp.ne.s32.totalorder %s73, %s74
      %p86 = scmp.eq.s32.totalorder %s22, 1
      %p87 = por %p85, %p86
      %p89 = scmp.ne.s32.totalorder %s74, %s88
      %p90 = scmp.eq.s32.totalorder %s22, 0
      %p91 = por %p89, %p90
      %s92 = ssub.s32 %s16, %s23
      %p93 = scmp.eq.s32.totalorder %s92, 0
      %s95 = sadd.s32 %s94, 1
      %s96 = scalar_select %p93, %s94, %s95
      %p99 = pneg %p93
      %p100 = scmp.eq.s32.totalorder %s16, 1
      %p101 = por %p99, %p100
      %p102 = scmp.ne.s32.totalorder %s94, %s97
      %p103 = scmp.eq.s32.totalorder %s16, 0
      %p104 = por %p102, %p103
      %p105 = scmp.ne.s32.totalorder %s94, %s97
      %p106 = scmp.eq.s32.totalorder %s21, 1
      %p107 = por %p105, %p106
      %p108 = scmp.ne.s32.totalorder %s97, %s98
      %p109 = scmp.eq.s32.totalorder %s21, 0
      %p110 = por %p108, %p109
      %p111 = scmp.ne.s32.totalorder %s97, %s98
      %p112 = scmp.eq.s32.totalorder %s22, 1
      %p113 = por %p111, %p112
      %p115 = scmp.ne.s32.totalorder %s98, %s114
      %p116 = scmp.eq.s32.totalorder %s22, 0
      %p117 = por %p115, %p116
      %p118 = scmp.le.s32.totalorder 1, %s16
      %p119 = scmp.lt.s32.totalorder %s16, 3
      %p120 = pnand %p118, %p119
      %p121 = pneg %p120
      // Predicated region
      $region9: #{tpu_custom_call.1} parent=5 // pred_check
        _
      $region10: #{tpu_custom_call.1} parent=5 // pred_check_branch
        %123 = sbr.rel (%p120) target = $region12
      $region11: #{tpu_custom_call.1} parent=5 // pred_region
        %s124 = ssub.s32 %s16, 1
        // Predicated region
        $region13: #{tpu_custom_call.1} parent=11 // pred_check
          %p125 = pneg %p63
        $region14: #{tpu_custom_call.1} parent=11 // pred_check_branch
          %127 = sbr.rel (%p125) target = $region16
        $region15: #{tpu_custom_call.1} parent=11 // pred_region
          %s129 = ssub.s32 6144, 6144
          %130 = vsyncadd [#allocation6], %s129
          %s131 = sshll.u32 [#allocation5], 4
          %s132 = int_to_ptr.vmem [resolvable:$true] %s131
          %137 = dma.hbm_to_vmem [thread:$0]  %s1, 6144, %s132, [#allocation6], 384, 384, 24
        $region16: #{tpu_custom_call.1} parent=11 // pred_fallthru
          _
        // Predicated region
        $region17: #{tpu_custom_call.1} parent=11 // pred_check
          %p138 = pneg %p84
        $region18: #{tpu_custom_call.1} parent=11 // pred_check_branch
          %140 = sbr.rel (%p138) target = $region20
        $region19: #{tpu_custom_call.1} parent=11 // pred_region
          %s142 = ssub.s32 128, 128
          %143 = vsyncadd [#allocation6], %s142
          %s145 = sshll.u32 [#allocation7], 4
          %s146 = int_to_ptr.vmem [resolvable:$true] %s145
          %148 = dma.hbm_to_vmem [thread:$0]  %s2, 128, %s146, [#allocation6]
        $region20: #{tpu_custom_call.1} parent=11 // pred_fallthru
          _
      $region12: #{tpu_custom_call.1} parent=5 // pred_fallthru
        _
      %p149 = scmp.lt.s32.totalorder %s16, 2
      // Predicated region
      $region21: #{tpu_custom_call.1} parent=5 // pred_check
        %p150 = pneg %p149
      $region22: #{tpu_custom_call.1} parent=5 // pred_check_branch
        %152 = sbr.rel (%p150) target = $region24
      $region23: #{tpu_custom_call.1} parent=5 // pred_region
        // Predicated region
        $region25: #{tpu_custom_call.1} parent=23 // pred_check
          %p153 = pneg %p36
        $region26: #{tpu_custom_call.1} parent=23 // pred_check_branch
          %155 = sbr.rel (%p153) target = $region28
        $region27: #{tpu_custom_call.1} parent=23 // pred_region
          %s156 = sand.u32 %s26, 1
          %s157 = scalar_lea.sflag [#allocation3], %s156
          %s158 = sand.u32 %s26, 1
          %s159 = smul.addr %s158, 16
          %s160 = scalar_lea.vmem [#allocation2], %s159
          %s161 = smul.u32 2, %s16
          %s163 = ssub.s32 256, 256
          %164 = vsyncadd %s157, %s163
          %s165 = smul.addr %s161, 128
          %s166 = scalar_lea.hbm %s0, %s165
          %s167 = sshll.u32 %s160, 4
          %s168 = int_to_ptr.vmem [resolvable:$true] %s167
          %173 = dma.hbm_to_vmem [thread:$0]  %s166, 256, %s168, %s157, 128, 128, 8
        $region28: #{tpu_custom_call.1} parent=23 // pred_fallthru
          _
      $region24: #{tpu_custom_call.1} parent=5 // pred_fallthru
        _
      %p174 = scmp.le.s32.totalorder 1, %s16
      %p175 = scmp.lt.s32.totalorder %s16, 3
      %p176 = pnand %p174, %p175
      %p177 = pneg %p176
      // Predicated region
      $region29: #{tpu_custom_call.1} parent=5 // pred_check
        _
      $region30: #{tpu_custom_call.1} parent=5 // pred_check_branch
        %179 = sbr.rel (%p176) target = $region32
      $region31: #{tpu_custom_call.1} parent=5 // pred_region
        %s180 = ssub.s32 %s16, 1
        %s181 = sand.u32 %s29, 1
        %s182 = scalar_lea.sflag [#allocation3], %s181
        %s183 = sand.u32 %s29, 1
        %s184 = smul.addr %s183, 16
        %s185 = scalar_lea.vmem [#allocation2], %s184
        // Predicated region
        $region33: #{tpu_custom_call.1} parent=31 // pred_check
          %p186 = pneg %p42
        $region34: #{tpu_custom_call.1} parent=31 // pred_check_branch
          %188 = sbr.rel (%p186) target = $region36
        $region35: #{tpu_custom_call.1} parent=31 // pred_region
          %189 = dma.done %s182, 256
        $region36: #{tpu_custom_call.1} parent=31 // pred_fallthru
          _
        // Predicated region
        $region37: #{tpu_custom_call.1} parent=31 // pred_check
          %p190 = pneg %p63
        $region38: #{tpu_custom_call.1} parent=31 // pred_check_branch
          %192 = sbr.rel (%p190) target = $region40
        $region39: #{tpu_custom_call.1} parent=31 // pred_region
          %193 = dma.done [#allocation6], 6144
        $region40: #{tpu_custom_call.1} parent=31 // pred_fallthru
          _
        // Predicated region
        $region41: #{tpu_custom_call.1} parent=31 // pred_check
          %p194 = pneg %p84
        $region42: #{tpu_custom_call.1} parent=31 // pred_check_branch
          %196 = sbr.rel (%p194) target = $region44
        $region43: #{tpu_custom_call.1} parent=31 // pred_region
          %197 = dma.done [#allocation6], 128
        $region44: #{tpu_custom_call.1} parent=31 // pred_fallthru
          _
        %s198 = sand.u32 %s29, 1
        %s199 = scalar_lea.sflag [#allocation3], %s198
        %s200 = sand.u32 %s29, 1
        %s201 = smul.addr %s200, 16
        %s202 = scalar_lea.vmem [#allocation2], %s201
        %p203 = pneg %p42
        %p204 = pneg %p39
        %p205 = pneg %p63
        %p206 = pneg %p60
        %p207 = pneg %p84
        %p208 = pneg %p81
        %p209 = pneg %p110
        %p210 = pneg %p107
        %s211 = sand.u32 %s97, 1
        %s212 = scalar_lea.sflag [#allocation4], %s211
        %s213 = sand.u32 %s97, 1
        %s214 = smul.addr %s213, 16
        %s215 = scalar_lea.vmem [#allocation8], %s214
        %s216 = smul.u32 2, %s21
        %s217 = smul.u32 2, %s21
        %v218 = vld [vmem:[%s185] sm:$0xff]
        %v219 = vld [vmem:[%s185 + $0x8] sm:$0xff]
        %v220 = vld [vmem:[#allocation5] sm:$0xff]
        %v221 = vld [vmem:[#allocation5 + $0x18] sm:$0xff]
        %v222 = vld [vmem:[#allocation5 + $0x30] sm:$0xff]
        %v223 = vld [vmem:[#allocation5 + $0x48] sm:$0xff]
        %v224 = vld [vmem:[#allocation5 + $0x60] sm:$0xff]
        %v225 = vld [vmem:[#allocation5 + $0x78] sm:$0xff]
        %v226 = vld [vmem:[#allocation5 + $0x90] sm:$0xff]
        %v227 = vld [vmem:[#allocation5 + $0xa8] sm:$0xff]
        %v228 = vld [vmem:[#allocation5 + $0xc0] sm:$0xff]
        %v229 = vld [vmem:[#allocation5 + $0xd8] sm:$0xff]
        %v230 = vld [vmem:[#allocation5 + $0xf0] sm:$0xff]
        %v231 = vld [vmem:[#allocation5 + $0x108] sm:$0xff]
        %v232 = vld [vmem:[#allocation5 + $0x120] sm:$0xff]
        %v233 = vld [vmem:[#allocation5 + $0x138] sm:$0xff]
        %v234 = vld [vmem:[#allocation5 + $0x150] sm:$0xff]
        %v235 = vld [vmem:[#allocation5 + $0x168] sm:$0xff]
        %v236 = vld [vmem:[#allocation5 + $0x8] sm:$0xff]
        %v237 = vld [vmem:[#allocation5 + $0x20] sm:$0xff]
        %v238 = vld [vmem:[#allocation5 + $0x38] sm:$0xff]
        %v239 = vld [vmem:[#allocation5 + $0x50] sm:$0xff]
        %v240 = vld [vmem:[#allocation5 + $0x68] sm:$0xff]
        %v241 = vld [vmem:[#allocation5 + $0x80] sm:$0xff]
        %v242 = vld [vmem:[#allocation5 + $0x98] sm:$0xff]
        %v243 = vld [vmem:[#allocation5 + $0xb0] sm:$0xff]
        %v244 = vld [vmem:[#allocation5 + $0xc8] sm:$0xff]
        %v245 = vld [vmem:[#allocation5 + $0xe0] sm:$0xff]
        %v246 = vld [vmem:[#allocation5 + $0xf8] sm:$0xff]
        %v247 = vld [vmem:[#allocation5 + $0x110] sm:$0xff]
        %v248 = vld [vmem:[#allocation5 + $0x128] sm:$0xff]
        %v249 = vld [vmem:[#allocation5 + $0x140] sm:$0xff]
        %v250 = vld [vmem:[#allocation5 + $0x158] sm:$0xff]
        %v251 = vld [vmem:[#allocation5 + $0x170] sm:$0xff]
        %v252 = vld [vmem:[#allocation5 + $0x10] sm:$0xff]
        %v253 = vld [vmem:[#allocation5 + $0x28] sm:$0xff]
        %v254 = vld [vmem:[#allocation5 + $0x40] sm:$0xff]
        %v255 = vld [vmem:[#allocation5 + $0x58] sm:$0xff]
        %v256 = vld [vmem:[#allocation5 + $0x70] sm:$0xff]
        %v257 = vld [vmem:[#allocation5 + $0x88] sm:$0xff]
        %v258 = vld [vmem:[#allocation5 + $0xa0] sm:$0xff]
        %v259 = vld [vmem:[#allocation5 + $0xb8] sm:$0xff]
        %v260 = vld [vmem:[#allocation5 + $0xd0] sm:$0xff]
        %v261 = vld [vmem:[#allocation5 + $0xe8] sm:$0xff]
        %v262 = vld [vmem:[#allocation5 + $0x100] sm:$0xff]
        %v263 = vld [vmem:[#allocation5 + $0x118] sm:$0xff]
        %v264 = vld [vmem:[#allocation5 + $0x130] sm:$0xff]
        %v265 = vld [vmem:[#allocation5 + $0x148] sm:$0xff]
        %v266 = vld [vmem:[#allocation5 + $0x160] sm:$0xff]
        %v267 = vld [vmem:[#allocation5 + $0x178] sm:$0xff]
        %v268 = vld [vmem:[#allocation7] sm:$0x1]
        %v269 = vld [vmem:[#allocation7 + $0x1] sm:$0x1]
        %v270 = vlaneseq
        %v271 = vshrl.u32 %v270, 7
        %v272 = vsub.s32 0, %v271
        %v273 = vrot.slane %v268, %v272
        %274 = vmatprep.subr.mxu0 0.0
        %275 = vmatpush1.msra.mxu0 %v235
        %276 = vmatprep.subr.mxu0 0.0
        %277 = vmatpush1.msra.mxu0 %v234
        %278 = vmatprep.subr.mxu0 0.0
        %279 = vmatpush1.msra.mxu0 %v233
        %280 = vmatprep.subr.mxu0 0.0
        %281 = vmatpush1.msra.mxu0 %v232
        %282 = vmatprep.subr.mxu0 0.0
        %283 = vmatpush1.msra.mxu0 %v231
        %284 = vmatprep.subr.mxu0 0.0
        %285 = vmatpush1.msra.mxu0 %v230
        %286 = vmatprep.subr.mxu0 0.0
        %287 = vmatpush1.msra.mxu0 %v229
        %288 = vmatprep.subr.mxu0 0.0
        %289 = vmatpush1.msra.mxu0 %v228
        %290 = vmatprep.subr.mxu0 0.0
        %291 = vmatpush1.msra.mxu0 %v227
        %292 = vmatprep.subr.mxu0 0.0
        %293 = vmatpush1.msra.mxu0 %v226
        %294 = vmatprep.subr.mxu0 0.0
        %295 = vmatpush1.msra.mxu0 %v225
        %296 = vmatprep.subr.mxu0 0.0
        %297 = vmatpush1.msra.mxu0 %v224
        %298 = vmatprep.subr.mxu0 0.0
        %299 = vmatpush1.msra.mxu0 %v223
        %300 = vmatprep.subr.mxu0 0.0
        %301 = vmatpush1.msra.mxu0 %v222
        %302 = vmatprep.subr.mxu0 0.0
        %303 = vmatpush1.msra.mxu0 %v221
        %304 = vmatprep.subr.mxu0 0.0
        %305 = vmatpush1.msra.mxu0 %v220
        %306 = vmatprep.subr.mxu0 0.0
        %307 = vmatpush2.msra.mxu0 0.0
        %308 = vmatprep.subr.mxu0 0.0
        %309 = vmatpush2.msra.mxu0 0.0
        %310 = vmatprep.subr.mxu0 0.0
        %311 = vmatpush2.msra.mxu0 0.0
        %312 = vmatprep.subr.mxu0 0.0
        %313 = vmatpush2.msra.mxu0 0.0
        %314 = vmatprep.subr.mxu0 0.0
        %315 = vmatpush2.msra.mxu0 0.0
        %316 = vmatprep.subr.mxu0 0.0
        %317 = vmatpush2.msra.mxu0 0.0
        %318 = vmatprep.subr.mxu0 0.0
        %319 = vmatpush2.msra.mxu0 0.0
        %320 = vmatprep.subr.mxu0 0.0
        %321 = vmatpush2.msra.mxu0 0.0
        %322 = vmatprep.subr.mxu0 0.0
        %323 = vmatpush2.msra.mxu0 0.0
        %324 = vmatprep.subr.mxu0 0.0
        %325 = vmatpush2.msra.mxu0 0.0
        %326 = vmatprep.subr.mxu0 0.0
        %327 = vmatpush2.msra.mxu0 0.0
        %328 = vmatprep.subr.mxu0 0.0
        %329 = vmatpush2.msra.mxu0 0.0
        %330 = vmatprep.subr.mxu0 0.0
        %331 = vmatpush2.msra.mxu0 0.0
        %332 = vmatprep.subr.mxu0 0.0
        %333 = vmatpush2.msra.mxu0 0.0
        %334 = vmatprep.subr.mxu0 0.0
        %335 = vmatpush2.msra.mxu0 0.0
        %336 = vmatprep.subr.mxu0 0.0
        %337 = vmatpush2.msra.mxu0 0.0
        %338 = vmatprep.mubr.f32.mxu0 0.0
        %339 = vmatmul.mubr.f32.gmra.mxu0 %v218
        %v340 = vpop.f32.mrf.mxu0
        %v341 = vadd.f32 %v273, %v340
        %v342 = vpop.f32.mrf.mxu0
        %343 = vmatprep.mubr.f32.mxu0 0.0
        %344 = vmatmul.mubr.f32.gmra.mxu0 %v219
        %v345 = vpop.f32.mrf.mxu0
        %v346 = vadd.f32 %v273, %v345
        %v347 = vpop.f32.mrf.mxu0
        %348 = vdwg.mxu0
        %v349 = vtanh.pop %v341
        %v350 = vtanh.pop %v346
        %v351 = vlaneseq
        %v352 = vshrl.u32 %v351, 7
        %v353 = vsub.s32 0, %v352
        %v354 = vrot.slane %v269, %v353
        %355 = vmatprep.subr.mxu0 0.0
        %356 = vmatpush1.msra.mxu0 %v251
        %357 = vmatprep.subr.mxu0 0.0
        %358 = vmatpush1.msra.mxu0 %v250
        %359 = vmatprep.subr.mxu0 0.0
        %360 = vmatpush1.msra.mxu0 %v249
        %361 = vmatprep.subr.mxu0 0.0
        %362 = vmatpush1.msra.mxu0 %v248
        %363 = vmatprep.subr.mxu0 0.0
        %364 = vmatpush1.msra.mxu0 %v247
        %365 = vmatprep.subr.mxu0 0.0
        %366 = vmatpush1.msra.mxu0 %v246
        %367 = vmatprep.subr.mxu0 0.0
        %368 = vmatpush1.msra.mxu0 %v245
        %369 = vmatprep.subr.mxu0 0.0
        %370 = vmatpush1.msra.mxu0 %v244
        %371 = vmatprep.subr.mxu0 0.0
        %372 = vmatpush1.msra.mxu0 %v243
        %373 = vmatprep.subr.mxu0 0.0
        %374 = vmatpush1.msra.mxu0 %v242
        %375 = vmatprep.subr.mxu0 0.0
        %376 = vmatpush1.msra.mxu0 %v241
        %377 = vmatprep.subr.mxu0 0.0
        %378 = vmatpush1.msra.mxu0 %v240
        %379 = vmatprep.subr.mxu0 0.0
        %380 = vmatpush1.msra.mxu0 %v239
        %381 = vmatprep.subr.mxu0 0.0
        %382 = vmatpush1.msra.mxu0 %v238
        %383 = vmatprep.subr.mxu0 0.0
        %384 = vmatpush1.msra.mxu0 %v237
        %385 = vmatprep.subr.mxu0 0.0
        %386 = vmatpush1.msra.mxu0 %v236
        %387 = vmatprep.subr.mxu0 0.0
        %388 = vmatpush2.msra.mxu0 0.0
        %389 = vmatprep.subr.mxu0 0.0
        %390 = vmatpush2.msra.mxu0 0.0
        %391 = vmatprep.subr.mxu0 0.0
        %392 = vmatpush2.msra.mxu0 0.0
        %393 = vmatprep.subr.mxu0 0.0
        %394 = vmatpush2.msra.mxu0 0.0
        %395 = vmatprep.subr.mxu0 0.0
        %396 = vmatpush2.msra.mxu0 0.0
        %397 = vmatprep.subr.mxu0 0.0
        %398 = vmatpush2.msra.mxu0 0.0
        %399 = vmatprep.subr.mxu0 0.0
        %400 = vmatpush2.msra.mxu0 0.0
        %401 = vmatprep.subr.mxu0 0.0
        %402 = vmatpush2.msra.mxu0 0.0
        %403 = vmatprep.subr.mxu0 0.0
        %404 = vmatpush2.msra.mxu0 0.0
        %405 = vmatprep.subr.mxu0 0.0
        %406 = vmatpush2.msra.mxu0 0.0
        %407 = vmatprep.subr.mxu0 0.0
        %408 = vmatpush2.msra.mxu0 0.0
        %409 = vmatprep.subr.mxu0 0.0
        %410 = vmatpush2.msra.mxu0 0.0
        %411 = vmatprep.subr.mxu0 0.0
        %412 = vmatpush2.msra.mxu0 0.0
        %413 = vmatprep.subr.mxu0 0.0
        %414 = vmatpush2.msra.mxu0 0.0
        %415 = vmatprep.subr.mxu0 0.0
        %416 = vmatpush2.msra.mxu0 0.0
        %417 = vmatprep.subr.mxu0 0.0
        %418 = vmatpush2.msra.mxu0 0.0
        %419 = vmatprep.mubr.f32.mxu0 0.0
        %420 = vmatmul.mubr.f32.gmra.mxu0 %v349
        %v421 = vpop.f32.mrf.mxu0
        %v422 = vadd.f32 %v354, %v421
        %v423 = vpop.f32.mrf.mxu0
        %424 = vmatprep.mubr.f32.mxu0 0.0
        %425 = vmatmul.mubr.f32.gmra.mxu0 %v350
        %v426 = vpop.f32.mrf.mxu0
        %v427 = vadd.f32 %v354, %v426
        %v428 = vpop.f32.mrf.mxu0
        %429 = vdwg.mxu0
        %v430 = vtanh.pop %v422
        %v431 = vtanh.pop %v427
        %vm432 = vcmp.gt.f32.partialorder %v218, 0.0
        %vm433 = vcmp.gt.f32.partialorder %v219, 0.0
        %v434 = vmul.f32 %v430, 1.442695
        %v435 = vpow.pop %v434
        %v436 = vmul.f32 %v431, 1.442695
        %v437 = vpow.pop %v436
        %v438 = vsel %vm432, %v435, 0.0
        %v439 = vsel %vm433, %v437, 0.0
        %440 = vmatprep.subr.mxu0 0.0
        %441 = vmatpush1.msra.mxu0 %v267
        %442 = vmatprep.subr.mxu0 0.0
        %443 = vmatpush1.msra.mxu0 %v266
        %444 = vmatprep.subr.mxu0 0.0
        %445 = vmatpush1.msra.mxu0 %v265
        %446 = vmatprep.subr.mxu0 0.0
        %447 = vmatpush1.msra.mxu0 %v264
        %448 = vmatprep.subr.mxu0 0.0
        %449 = vmatpush1.msra.mxu0 %v263
        %450 = vmatprep.subr.mxu0 0.0
        %451 = vmatpush1.msra.mxu0 %v262
        %452 = vmatprep.subr.mxu0 0.0
        %453 = vmatpush1.msra.mxu0 %v261
        %454 = vmatprep.subr.mxu0 0.0
        %455 = vmatpush1.msra.mxu0 %v260
        %456 = vmatprep.subr.mxu0 0.0
        %457 = vmatpush1.msra.mxu0 %v259
        %458 = vmatprep.subr.mxu0 0.0
        %459 = vmatpush1.msra.mxu0 %v258
        %460 = vmatprep.subr.mxu0 0.0
        %461 = vmatpush1.msra.mxu0 %v257
        %462 = vmatprep.subr.mxu0 0.0
        %463 = vmatpush1.msra.mxu0 %v256
        %464 = vmatprep.subr.mxu0 0.0
        %465 = vmatpush1.msra.mxu0 %v255
        %466 = vmatprep.subr.mxu0 0.0
        %467 = vmatpush1.msra.mxu0 %v254
        %468 = vmatprep.subr.mxu0 0.0
        %469 = vmatpush1.msra.mxu0 %v253
        %470 = vmatprep.subr.mxu0 0.0
        %471 = vmatpush1.msra.mxu0 %v252
        %472 = vmatprep.subr.mxu0 0.0
        %473 = vmatpush2.msra.mxu0 0.0
        %474 = vmatprep.subr.mxu0 0.0
        %475 = vmatpush2.msra.mxu0 0.0
        %476 = vmatprep.subr.mxu0 0.0
        %477 = vmatpush2.msra.mxu0 0.0
        %478 = vmatprep.subr.mxu0 0.0
        %479 = vmatpush2.msra.mxu0 0.0
        %480 = vmatprep.subr.mxu0 0.0
        %481 = vmatpush2.msra.mxu0 0.0
        %482 = vmatprep.subr.mxu0 0.0
        %483 = vmatpush2.msra.mxu0 0.0
        %484 = vmatprep.subr.mxu0 0.0
        %485 = vmatpush2.msra.mxu0 0.0
        %486 = vmatprep.subr.mxu0 0.0
        %487 = vmatpush2.msra.mxu0 0.0
        %488 = vmatprep.subr.mxu0 0.0
        %489 = vmatpush2.msra.mxu0 0.0
        %490 = vmatprep.subr.mxu0 0.0
        %491 = vmatpush2.msra.mxu0 0.0
        %492 = vmatprep.subr.mxu0 0.0
        %493 = vmatpush2.msra.mxu0 0.0
        %494 = vmatprep.subr.mxu0 0.0
        %495 = vmatpush2.msra.mxu0 0.0
        %496 = vmatprep.subr.mxu0 0.0
        %497 = vmatpush2.msra.mxu0 0.0
        %498 = vmatprep.subr.mxu0 0.0
        %499 = vmatpush2.msra.mxu0 0.0
        %500 = vmatprep.subr.mxu0 0.0
        %501 = vmatpush2.msra.mxu0 0.0
        %502 = vmatprep.subr.mxu0 0.0
        %503 = vmatpush2.msra.mxu0 0.0
        %504 = vmatprep.mubr.f32.mxu0 0.0
        %505 = vmatmul.mubr.f32.gmra.mxu0 %v438
        %v506 = vpop.f32.mrf.mxu0
        %v507 = vadd.f32 0.0, %v506
        %v508 = vpop.f32.mrf.mxu0
        %509 = vmatprep.mubr.f32.mxu0 0.0
        %510 = vmatmul.mubr.f32.gmra.mxu0 %v439
        %v511 = vpop.f32.mrf.mxu0
        %v512 = vadd.f32 0.0, %v511
        %v513 = vpop.f32.mrf.mxu0
        %514 = vdwg.mxu0
        %v515 = vmax.f32 %v507, 1e-30
        %v516 = vmax.f32 %v512, 1e-30
        %v517 = vrcp.pop %v515
        %v518 = vrcp.pop %v516
        %v519 = vmul.f32 %v515, %v517
        %v520 = vmul.f32 %v516, %v518
        %v521 = vsub.f32 2.0, %v519
        %v522 = vsub.f32 2.0, %v520
        %v523 = vmul.f32 %v517, %v521
        %v524 = vmul.f32 %v518, %v522
        %v525 = vmul.f32 %v438, %v523
        %v526 = vmul.f32 %v439, %v524
        %527 = vst [vmem:[%s215] sm:$0xff] %v525
        %528 = vst [vmem:[%s215 + $0x8] sm:$0xff] %v526
        %s529 = sand.u32 %s97, 1
        %s530 = scalar_lea.sflag [#allocation4], %s529
        %s531 = sand.u32 %s97, 1
        %s532 = smul.addr %s531, 16
        %s533 = scalar_lea.vmem [#allocation8], %s532
        // Predicated region
        $region45: #{tpu_custom_call.1} parent=31 // pred_check
          %p534 = pneg %p107
        $region46: #{tpu_custom_call.1} parent=31 // pred_check_branch
          %536 = sbr.rel (%p534) target = $region48
        $region47: #{tpu_custom_call.1} parent=31 // pred_region
          %s537 = smul.u32 2, %s21
          %s539 = ssub.s32 256, 256
          %540 = vsyncadd %s530, %s539
          %s541 = smul.addr %s537, 128
          %s542 = scalar_lea.hbm %s3, %s541
          %s543 = sshll.u32 %s533, 4
          %s544 = int_to_ptr.vmem [resolvable:$true] %s543
          %549 = dma.vmem_to_hbm [thread:$0]  %s544, 256, %s542, %s530, 128, 128, 8
        $region48: #{tpu_custom_call.1} parent=31 // pred_fallthru
          _
      $region32: #{tpu_custom_call.1} parent=5 // pred_fallthru
        _
      %p550 = scmp.le.s32.totalorder 2, %s16
      // Predicated region
      $region49: #{tpu_custom_call.1} parent=5 // pred_check
        %p551 = pneg %p550
      $region50: #{tpu_custom_call.1} parent=5 // pred_check_branch
        %553 = sbr.rel (%p551) target = $region52
      $region51: #{tpu_custom_call.1} parent=5 // pred_region
        %s554 = ssub.s32 %s16, 2
        // Predicated region
        $region53: #{tpu_custom_call.1} parent=51 // pred_check
          %p555 = pneg %p113
        $region54: #{tpu_custom_call.1} parent=51 // pred_check_branch
          %557 = sbr.rel (%p555) target = $region56
        $region55: #{tpu_custom_call.1} parent=51 // pred_region
          %s558 = sand.u32 %s98, 1
          %s559 = scalar_lea.sflag [#allocation4], %s558
          %s560 = sand.u32 %s98, 1
          %s561 = smul.addr %s560, 16
          %s562 = scalar_lea.vmem [#allocation8], %s561
          %563 = dma.done %s559, 256
        $region56: #{tpu_custom_call.1} parent=51 // pred_fallthru
          _
      $region52: #{tpu_custom_call.1} parent=5 // pred_fallthru
        _
    $region6: #{tpu_custom_call.1} parent=1 // loop_footer
      %s20 = sadd.s32 1, %s16
    $region7: #{tpu_custom_call.1} parent=1 // loop_footer_branch
      %15 = sbr.rel target = $region3
    $region8: #{tpu_custom_call.1} parent=1 // loop_exit
      _
    %564 = vsyncpa [#allocation3], 1
    %s565 = scalar_lea.sflag [#allocation3], 1
    %566 = vsyncpa %s565, 1
    %567 = vsyncpa [#allocation6], 1
    %568 = vsyncpa [#allocation4], 1
    %s569 = scalar_lea.sflag [#allocation4], 1
    %570 = vsyncpa %s569, 1

</llo_original>
